<compile_context>
chip_gen: v7x
topology: tpu7x:2x2x1
jax: 0.10.0
libtpu: 0.0.40
codegen_flags: <defaults>
</compile_context>

<pallas_src>
import functools

import jax
import jax.numpy as jnp
from jax.experimental import pallas as pl
from jax.experimental.pallas import tpu as pltpu


def _round_up(x, m):
    return ((x + m - 1) // m) * m


def _divisor_block(n, unit, cap):
    """Largest multiple of `unit` that divides n and is <= cap (n % unit == 0)."""
    b = (max(unit, min(cap, n)) // unit) * unit
    while b > unit:
        if n % b == 0:
            return b
        b -= unit
    return unit


def _vmem_limit_bytes():
    """Scoped VMEM limit: physical minus headroom, capped at 64 MiB.

    v5e/v6e (128 MiB physical) -> 64 MiB; v7x (64 MiB physical) -> 48 MiB.
    Falls back to 48 MiB if the hardware query is unavailable.
    """
    cap = 64 * 1024 * 1024
    try:
        cap = int(pltpu.get_tpu_info().vmem_capacity_bytes)
    except Exception:
        pass
    return int(max(32 * 1024 * 1024, min(cap - 16 * 1024 * 1024, 64 * 1024 * 1024)))


def _static_pow(x, g):
    """x**g; integer g is unrolled into VPU multiplies (no EUP exp/log)."""
    g = float(g)
    if g == 0.0:
        return jnp.ones_like(x)
    if g.is_integer() and 0.0 < g <= 16.0:
        gi = int(g)
        acc = None
        base = x
        while gi:
            if gi & 1:
                acc = base if acc is None else acc * base
            gi >>= 1
            if gi:
                base = base * base
        return acc
    # Generic (non-integer gamma) fallback: goes through EUP exp/log.
    return jnp.power(x, jnp.float32(g))


def _strip_loss(x, t, col_ids, *, gamma_neg, gamma_pos, clip):
    """Elementwise ASL for one (rows, block_c) strip.

    x: (rows, block_c) f32 logits; t: (rows, 1) int32 labels;
    col_ids: (1, block_c) int32 absolute class indices.
    Two EUP transcendentals per element (tanh + log).
    """
    one_hot = col_ids == t                              # (rows, block_c) bool
    # sigmoid(x) == 0.5 + 0.5*tanh(0.5*x); tanh is one native EUP op
    # (vs exp + reciprocal for a generic sigmoid lowering).
    p = 0.5 + 0.5 * jnp.tanh(0.5 * x)
    if clip > 0.0:
        # Matches the reference module: torch.clamp(probs, clip, 1 - clip).
        p = jnp.clip(p, clip, 1.0 - clip)
    # pt/select formulation: one log + one (unrolled) pow covers both branches.
    #   pos: -log(p)   * (1-p)^gamma_pos
    #   neg: -log(1-p) * p^gamma_neg
    pt = jnp.where(one_hot, p, 1.0 - p)
    u = 1.0 - pt                                        # (1-p) on pos, p on neg
    mod = jnp.where(one_hot,
                    _static_pow(u, gamma_pos),
                    _static_pow(u, gamma_neg))
    return -jnp.log(pt) * mod


def _asl_reduce_kernel(logits_ref, targets_ref, out_ref, *, block_b, block_c,
                       num_rows, num_cols, mask_rows, mask_cols,
                       gamma_neg, gamma_pos, clip):
    """mean/sum path: accumulate per-row-block partial sums into out_ref.

    out_ref is an (8, block_c) f32 block that stays VMEM-resident across the
    column (j) sweep of one row block; the wrapper sums the partials.
    """
    j = pl.program_id(1)

    @pl.when(j == 0)
    def _init():
        out_ref[...] = jnp.zeros_like(out_ref)

    # 1-D iotas only; hoisted out of the strip loop.
    col_ids = (jax.lax.broadcasted_iota(jnp.int32, (1, block_c), 1)
               + j * block_c)
    col_ok = (col_ids < num_cols) if mask_cols else None
    row_base = pl.program_id(0) * block_b
    row_iota = (jax.lax.broadcasted_iota(jnp.int32, (8, 1), 0)
                if mask_rows else None)

    def strip_loss(r0, rows):
        x = logits_ref[pl.ds(r0, rows), :].astype(jnp.float32)
        t = targets_ref[pl.ds(r0, rows), :]
        loss = _strip_loss(x, t, col_ids, gamma_neg=gamma_neg,
                           gamma_pos=gamma_pos, clip=clip)
        # Selects (not multiplies) so NaNs from garbage edge-block data vanish.
        if mask_cols:
            loss = jnp.where(col_ok, loss, 0.0)
        if mask_rows:
            row_ok = (row_iota[:rows, :] + (row_base + r0)) < num_rows
            loss = jnp.where(row_ok, loss, 0.0)
        return loss

    n_full = block_b // 8
    rem = block_b % 8
    if n_full > 0:
        def body(s, carry):
            r0 = pl.multiple_of(s * 8, 8)
            out_ref[...] += strip_loss(r0, 8)
            return carry
        jax.lax.fori_loop(0, n_full, body, 0, unroll=min(4, n_full))
    if rem > 0:  # only when block_b == B (full dim) and B % 8 != 0
        out_ref[0:rem, :] += strip_loss(n_full * 8, rem)


def _asl_none_kernel(logits_ref, targets_ref, out_ref, *, block_b, block_c,
                     gamma_neg, gamma_pos, clip):
    """'none' path: elementwise loss, written strip-wise in the logits dtype."""
    col_ids = (jax.lax.broadcasted_iota(jnp.int32, (1, block_c), 1)
               + pl.program_id(1) * block_c)

    def do_strip(r0, rows):
        x = logits_ref[pl.ds(r0, rows), :].astype(jnp.float32)
        t = targets_ref[pl.ds(r0, rows), :]
        loss = _strip_loss(x, t, col_ids, gamma_neg=gamma_neg,
                           gamma_pos=gamma_pos, clip=clip)
        out_ref[pl.ds(r0, rows), :] = loss.astype(out_ref.dtype)

    n_full = block_b // 8
    rem = block_b % 8
    if n_full > 0:
        def body(s, carry):
            r0 = pl.multiple_of(s * 8, 8)
            do_strip(r0, 8)
            return carry
        jax.lax.fori_loop(0, n_full, body, 0, unroll=min(4, n_full))
    if rem > 0:
        do_strip(n_full * 8, rem)


def asymmetric_loss(logits, targets, *, gamma_neg=4.0, gamma_pos=1.0,
                    clip=0.05, reduction='mean',
                    block_bytes=None, col_cap=2048):
    """Pallas implementation of AsymmetricLoss.forward.

    logits:  [B, C] float (f32 or bf16); targets: [B] int class indices.
    block_bytes / col_cap are tuning knobs (defaults: ~8 MiB tiles, 2048 lanes).
    """
    assert logits.ndim == 2 and targets.ndim == 1
    B, C = logits.shape
    targets = targets.astype(jnp.int32)
    itemsize = jnp.dtype(logits.dtype).itemsize
    vmem_limit = _vmem_limit_bytes()
    col_cap = max(128, (int(col_cap) // 128) * 128)
    row_cap = 4096
    if block_bytes is None:
        # 'none' double-buffers both the input and the (same-dtype) output
        # tile; the reduce path double-buffers only the input.
        n_bufs = 4 if reduction == 'none' else 2
        block_bytes = min(8 * 1024 * 1024, vmem_limit // (n_bufs + 1))

    common = dict(gamma_neg=float(gamma_neg), gamma_pos=float(gamma_pos),
                  clip=float(clip))

    if reduction in ('mean', 'sum'):
        # No HBM-side padding at all: edge blocks are masked in-kernel.
        block_c = C if C <= col_cap else col_cap            # full dim or 128-mult
        row_budget = max(8, min(row_cap,
                                ((block_bytes // (block_c * itemsize)) // 8) * 8))
        block_b = B if B <= row_budget else row_budget       # full dim or 8-mult
        grid = (pl.cdiv(B, block_b), pl.cdiv(C, block_c))
        mask_rows = (B % block_b) != 0
        mask_cols = (C % block_c) != 0
        targets2d = targets.reshape(B, 1)

        kernel = functools.partial(
            _asl_reduce_kernel, block_b=block_b, block_c=block_c,
            num_rows=B, num_cols=C, mask_rows=mask_rows, mask_cols=mask_cols,
            **common)
        partials = pl.pallas_call(
            kernel,
            out_shape=jax.ShapeDtypeStruct((grid[0] * 8, block_c), jnp.float32),
            grid_spec=pltpu.PrefetchScalarGridSpec(
                num_scalar_prefetch=0,
                grid=grid,
                in_specs=[
                    pl.BlockSpec((block_b, block_c), lambda i, j: (i, j)),
                    pl.BlockSpec((block_b, 1), lambda i, j: (i, 0)),
                ],
                out_specs=pl.BlockSpec((8, block_c), lambda i, j: (i, 0)),
            ),
            compiler_params=pltpu.CompilerParams(
                # Row blocks are independent -> v7x's 2 TensorCores can split
                # them; the column axis carries the running accumulator.
                dimension_semantics=("parallel", "arbitrary"),
                vmem_limit_bytes=vmem_limit,
            ),
        )(logits, targets2d)
        total = jnp.sum(partials, dtype=jnp.float32)
        if reduction == 'mean':
            total = total * jnp.float32(1.0 / (B * C))       # multiply, not divide
        return total

    # ---------------- reduction == 'none' ----------------
    # Avoid padding whenever the shapes allow (full-dim blocks are legal for
    # any size); pad minimally (to 8 rows / 128 lanes) only when a dim is both
    # unaligned and larger than one block, because edge-block output stores
    # are not relied upon here.
    if C % 128 == 0:
        C_pad, block_c = C, _divisor_block(C, 128, col_cap)
    elif C <= col_cap:
        C_pad, block_c = C, C
    else:
        C_pad = _round_up(C, 128)
        block_c = _divisor_block(C_pad, 128, col_cap)
    row_budget = max(8, min(row_cap,
                            ((block_bytes // (block_c * itemsize)) // 8) * 8))
    if B % 8 == 0:
        B_pad, block_b = B, _divisor_block(B, 8, row_budget)
    elif B <= row_budget:
        B_pad, block_b = B, B
    else:
        B_pad = _round_up(B, 8)
        block_b = _divisor_block(B_pad, 8, row_budget)

    padded = (B_pad, C_pad) != (B, C)
    if padded:
        logits = jnp.pad(logits, ((0, B_pad - B), (0, C_pad - C)))
        targets = jnp.pad(targets, (0, B_pad - B))
    targets2d = targets.reshape(B_pad, 1)
    grid = (B_pad // block_b, C_pad // block_c)

    kernel = functools.partial(_asl_none_kernel, block_b=block_b,
                               block_c=block_c, **common)
    out = pl.pallas_call(
        kernel,
        out_shape=jax.ShapeDtypeStruct((B_pad, C_pad), logits.dtype),
        grid_spec=pltpu.PrefetchScalarGridSpec(
            num_scalar_prefetch=0,
            grid=grid,
            in_specs=[
                pl.BlockSpec((block_b, block_c), lambda i, j: (i, j)),
                pl.BlockSpec((block_b, 1), lambda i, j: (i, 0)),
            ],
            out_specs=pl.BlockSpec((block_b, block_c), lambda i, j: (i, j)),
        ),
        compiler_params=pltpu.CompilerParams(
            dimension_semantics=("parallel", "parallel"),
            vmem_limit_bytes=vmem_limit,
        ),
    )(logits, targets2d)
    if padded:
        out = out[:B, :C]
    return out


def _reference(logits, targets, gamma_neg=4.0, gamma_pos=1.0, clip=0.05,
               reduction='mean'):
    """Plain-JAX mirror of the PyTorch AsymmetricLoss.forward in the spec."""
    num_classes = logits.shape[1]
    one_hot = jax.nn.one_hot(targets, num_classes, dtype=jnp.float32)
    probs = jax.nn.sigmoid(logits.astype(jnp.float32))
    if clip > 0:
        probs = jnp.clip(probs, clip, 1.0 - clip)
    pos = one_hot * jnp.log(probs) * jnp.power(1.0 - probs, gamma_pos)
    neg = (1.0 - one_hot) * jnp.log(1.0 - probs) * jnp.power(probs, gamma_neg)
    loss = -(pos + neg)
    if reduction == 'mean':
        return loss.mean()
    if reduction == 'sum':
        return loss.sum()
    return loss


if __name__ == "__main__":
    key = jax.random.PRNGKey(0)

    def check(B, C, **kw):
        k1, k2 = jax.random.split(jax.random.fold_in(key, B * 1000 + C))
        logits = jax.random.normal(k1, (B, C), dtype=jnp.float32)
        targets = jax.random.randint(k2, (B,), 0, C, dtype=jnp.int32)
        outs = {r: asymmetric_loss(logits, targets, reduction=r, **kw)
                for r in ('mean', 'sum', 'none')}
        jax.block_until_ready(outs)
        for r, o in outs.items():
            ref = _reference(logits, targets, reduction=r)
            assert jnp.allclose(o, ref, rtol=5e-5, atol=5e-5), (r, B, C, o, ref)

    # Small classification-style shapes ([B, C] logits, [B] int labels).
    check(16, 100)                                   # single-block fast path
    check(20, 300, block_bytes=4096, col_cap=128)    # multi-block + edge masking
    print("KERNEL_OK")
</pallas_src>

<mosaic_0001>
module attributes {stable_mosaic.version = 11 : i64} {
  func.func @_asl_reduce_kernel(%arg0: i32, %arg1: i32, %arg2: memref<16x100xf32, #tpu.memory_space<vmem>>, %arg3: memref<16x1xi32, #tpu.memory_space<vmem>>, %arg4: memref<8x100xf32, #tpu.memory_space<vmem>>) attributes {dimension_semantics = [#tpu.dimension_semantics<parallel>, #tpu.dimension_semantics<arbitrary>], iteration_bounds = array<i64: 1, 1>, scalar_prefetch = 0 : i64, scratch_operands = 0 : i64, tpu.core_type = #tpu.core_type<tc>, window_params = [{transform_indices = @transform_0, window_bounds = array<i64: 16, 100>}, {transform_indices = @transform_1, window_bounds = array<i64: 16, 1>}, {transform_indices = @transform_2, window_bounds = array<i64: 8, 100>}]} {
    %c0_i32 = arith.constant 0 : i32
    %0 = arith.cmpi eq, %arg1, %c0_i32 : i32
    %1 = arith.extui %0 : i1 to i32
    %c0_i32_0 = arith.constant 0 : i32
    %2 = arith.cmpi ne, %1, %c0_i32_0 : i32
    scf.if %2 {
      %cst_29 = arith.constant 0.000000e+00 : f32
      %77 = vector.broadcast %cst_29 : f32 to vector<8x100xf32>
      %c0_30 = arith.constant 0 : index
      %c0_31 = arith.constant 0 : index
      %78 = vector.load %arg4[%c0_30, %c0_31] : memref<8x100xf32, #tpu.memory_space<vmem>>, vector<8x100xf32>
      tpu.vector_store %arg4[%c0_30, %c0_31], %77 {strides = array<i32>} : memref<8x100xf32, #tpu.memory_space<vmem>>, vector<8x100xf32>,
    } else {
    }
    %3 = tpu.iota {dimensions = array<i32: 1>} : vector<1x100xi32>
    %c100_i32 = arith.constant 100 : i32
    %4 = arith.muli %arg1, %c100_i32 : i32
    %5 = vector.broadcast %4 : i32 to vector<1x100xi32>
    %6 = arith.addi %3, %5 : vector<1x100xi32>
    %c0_i32_1 = arith.constant 0 : i32
    %c8_i32 = arith.constant 8 : i32
    %7 = arith.muli %c0_i32_1, %c8_i32 : i32
    %8 = tpu.assume_multiple %7, 8 : i32
    %c0 = arith.constant 0 : index
    %c0_2 = arith.constant 0 : index
    %9 = vector.load %arg4[%c0, %c0_2] : memref<8x100xf32, #tpu.memory_space<vmem>>, vector<8x100xf32>
    %10 = arith.index_cast %8 : i32 to index
    %c0_3 = arith.constant 0 : index
    %11 = vector.load %arg2[%10, %c0_3] : memref<16x100xf32, #tpu.memory_space<vmem>>, vector<8x100xf32>
    %12 = arith.index_cast %8 : i32 to index
    %c0_4 = arith.constant 0 : index
    %13 = vector.load %arg3[%12, %c0_4] : memref<16x1xi32, #tpu.memory_space<vmem>>, vector<8x1xi32>
    %14 = vector.broadcast %6 : vector<1x100xi32> to vector<8x100xi32>
    %15 = vector.broadcast %13 : vector<8x1xi32> to vector<8x100xi32>
    %16 = arith.cmpi eq, %14, %15 : vector<8x100xi32>
    %cst = arith.constant 5.000000e-01 : f32
    %17 = vector.broadcast %cst : f32 to vector<8x100xf32>
    %18 = arith.mulf %17, %11 : vector<8x100xf32>
    %19 = math.tanh %18 : vector<8x100xf32>
    %cst_5 = arith.constant 5.000000e-01 : f32
    %20 = vector.broadcast %cst_5 : f32 to vector<8x100xf32>
    %21 = arith.mulf %20, %19 : vector<8x100xf32>
    %cst_6 = arith.constant 5.000000e-01 : f32
    %22 = vector.broadcast %cst_6 : f32 to vector<8x100xf32>
    %23 = arith.addf %22, %21 : vector<8x100xf32>
    %cst_7 = arith.constant 5.000000e-02 : f32
    %cst_8 = arith.constant 0.949999988 : f32
    %24 = vector.broadcast %cst_7 : f32 to vector<8x100xf32>
    %25 = arith.maximumf %24, %23 : vector<8x100xf32>
    %26 = vector.broadcast %cst_8 : f32 to vector<8x100xf32>
    %27 = arith.minimumf %26, %25 : vector<8x100xf32>
    %cst_9 = arith.constant 1.000000e+00 : f32
    %28 = vector.broadcast %cst_9 : f32 to vector<8x100xf32>
    %29 = arith.subf %28, %27 : vector<8x100xf32>
    %30 = arith.select %16, %27, %29 : vector<8x100xi1>, vector<8x100xf32>
    %cst_10 = arith.constant 1.000000e+00 : f32
    %31 = vector.broadcast %cst_10 : f32 to vector<8x100xf32>
    %32 = arith.subf %31, %30 : vector<8x100xf32>
    %33 = arith.mulf %32, %32 : vector<8x100xf32>
    %34 = arith.mulf %33, %33 : vector<8x100xf32>
    %35 = arith.select %16, %32, %34 : vector<8x100xi1>, vector<8x100xf32>
    %36 = math.log %30 : vector<8x100xf32>
    %cst_11 = arith.constant 0.000000e+00 : f32
    %37 = vector.broadcast %cst_11 : f32 to vector<8x100xf32>
    %38 = arith.subf %37, %36 : vector<8x100xf32>
    %39 = arith.mulf %38, %35 : vector<8x100xf32>
    %40 = arith.addf %9, %39 : vector<8x100xf32>
    %c0_12 = arith.constant 0 : index
    %c0_13 = arith.constant 0 : index
    %41 = vector.load %arg4[%c0_12, %c0_13] : memref<8x100xf32, #tpu.memory_space<vmem>>, vector<8x100xf32>
    tpu.vector_store %arg4[%c0_12, %c0_13], %40 {strides = array<i32>} : memref<8x100xf32, #tpu.memory_space<vmem>>, vector<8x100xf32>,
    %c1_i32 = arith.constant 1 : i32
    %c8_i32_14 = arith.constant 8 : i32
    %42 = arith.muli %c1_i32, %c8_i32_14 : i32
    %43 = tpu.assume_multiple %42, 8 : i32
    %c0_15 = arith.constant 0 : index
    %c0_16 = arith.constant 0 : index
    %44 = vector.load %arg4[%c0_15, %c0_16] : memref<8x100xf32, #tpu.memory_space<vmem>>, vector<8x100xf32>
    %45 = arith.index_cast %43 : i32 to index
    %c0_17 = arith.constant 0 : index
    %46 = vector.load %arg2[%45, %c0_17] : memref<16x100xf32, #tpu.memory_space<vmem>>, vector<8x100xf32>
    %47 = arith.index_cast %43 : i32 to index
    %c0_18 = arith.constant 0 : index
    %48 = vector.load %arg3[%47, %c0_18] : memref<16x1xi32, #tpu.memory_space<vmem>>, vector<8x1xi32>
    %49 = vector.broadcast %6 : vector<1x100xi32> to vector<8x100xi32>
    %50 = vector.broadcast %48 : vector<8x1xi32> to vector<8x100xi32>
    %51 = arith.cmpi eq, %49, %50 : vector<8x100xi32>
    %cst_19 = arith.constant 5.000000e-01 : f32
    %52 = vector.broadcast %cst_19 : f32 to vector<8x100xf32>
    %53 = arith.mulf %52, %46 : vector<8x100xf32>
    %54 = math.tanh %53 : vector<8x100xf32>
    %cst_20 = arith.constant 5.000000e-01 : f32
    %55 = vector.broadcast %cst_20 : f32 to vector<8x100xf32>
    %56 = arith.mulf %55, %54 : vector<8x100xf32>
    %cst_21 = arith.constant 5.000000e-01 : f32
    %57 = vector.broadcast %cst_21 : f32 to vector<8x100xf32>
    %58 = arith.addf %57, %56 : vector<8x100xf32>
    %cst_22 = arith.constant 5.000000e-02 : f32
    %cst_23 = arith.constant 0.949999988 : f32
    %59 = vector.broadcast %cst_22 : f32 to vector<8x100xf32>
    %60 = arith.maximumf %59, %58 : vector<8x100xf32>
    %61 = vector.broadcast %cst_23 : f32 to vector<8x100xf32>
    %62 = arith.minimumf %61, %60 : vector<8x100xf32>
    %cst_24 = arith.constant 1.000000e+00 : f32
    %63 = vector.broadcast %cst_24 : f32 to vector<8x100xf32>
    %64 = arith.subf %63, %62 : vector<8x100xf32>
    %65 = arith.select %51, %62, %64 : vector<8x100xi1>, vector<8x100xf32>
    %cst_25 = arith.constant 1.000000e+00 : f32
    %66 = vector.broadcast %cst_25 : f32 to vector<8x100xf32>
    %67 = arith.subf %66, %65 : vector<8x100xf32>
    %68 = arith.mulf %67, %67 : vector<8x100xf32>
    %69 = arith.mulf %68, %68 : vector<8x100xf32>
    %70 = arith.select %51, %67, %69 : vector<8x100xi1>, vector<8x100xf32>
    %71 = math.log %65 : vector<8x100xf32>
    %cst_26 = arith.constant 0.000000e+00 : f32
    %72 = vector.broadcast %cst_26 : f32 to vector<8x100xf32>
    %73 = arith.subf %72, %71 : vector<8x100xf32>
    %74 = arith.mulf %73, %70 : vector<8x100xf32>
    %75 = arith.addf %44, %74 : vector<8x100xf32>
    %c0_27 = arith.constant 0 : index
    %c0_28 = arith.constant 0 : index
    %76 = vector.load %arg4[%c0_27, %c0_28] : memref<8x100xf32, #tpu.memory_space<vmem>>, vector<8x100xf32>
    tpu.vector_store %arg4[%c0_27, %c0_28], %75 {strides = array<i32>} : memref<8x100xf32, #tpu.memory_space<vmem>>, vector<8x100xf32>,
    %c2_i32 = arith.constant 2 : i32
    return
  }
  func.func @transform_0(%arg0: i32, %arg1: i32) -> (i32, i32) {
    %c0_i32 = arith.constant 0 : i32
    return %arg0, %arg1 : i32, i32
  }
  func.func @transform_1(%arg0: i32, %arg1: i32) -> (i32, i32) {
    %c0_i32 = arith.constant 0 : i32
    %c0_i32_0 = arith.constant 0 : i32
    return %arg0, %c0_i32 : i32, i32
  }
  func.func @transform_2(%arg0: i32, %arg1: i32) -> (i32, i32) {
    %c0_i32 = arith.constant 0 : i32
    %c0_i32_0 = arith.constant 0 : i32
    return %arg0, %c0_i32 : i32, i32
  }
}

</mosaic_0001>

<llo_original>
// kernel: tpu_custom_call.1
$region0: #{tpu_custom_call.1}
  #allocation0 [shape = 'u32[]', space=smem, size = 0x4, offset = 0x4, fixed_abs, tag = 'smem constant byte address 0x4 - core index']
  #allocation1 [shape = 'u32[144,128]{1,0:T(1,128)}', space=vmem, size = 0x12000, scoped, tag = 'internal scratch']
  %s0 = inlined_call_operand.vmem [shape: f32[16,100], index: 0, kind: input, shape index: {}]
  %s1 = inlined_call_operand.vmem [shape: s32[16,1], index: 1, kind: input, shape index: {}]
  %s2 = inlined_call_operand.hbm [shape: f32[8,100], index: 2, kind: output, shape index: {}]
  %s3 = sld [smem:[#allocation0]]
  $region22: #{tpu_custom_call.1} parent=0
    _
  %s5 = ssub.s32 1, %s3
  %s6 = scalar_select 0, %s5, %s3
  $region1: #{tpu_custom_call.1} parent=0
    #allocation2 [shape = 'u8[4096]{0}', space=vmem, size = 0x1000, scoped, tag = 'output window, operand 0, single buffered']
    #allocation3 [shape = 's32[1]{0}', space=sflag, size = 0x4, scoped, tag = 'scoped memory for tpu_custom_call.1']
    %7 = vsyncpa [#allocation3], 0
    // Predicated region
    $region2: #{tpu_custom_call.1} parent=1 // pred_check
      _
    $region3: #{tpu_custom_call.1} parent=1 // pred_check_branch
      %9 = sbr.rel (0) target = $region5
    $region4: #{tpu_custom_call.1} parent=1 // pred_region
      _
    $region5: #{tpu_custom_call.1} parent=1 // pred_fallthru
      _
    // Predicated region
    $region6: #{tpu_custom_call.1} parent=1 // pred_check
      _
    $region7: #{tpu_custom_call.1} parent=1 // pred_check_branch
      %11 = sbr.rel (0) target = $region9
    $region8: #{tpu_custom_call.1} parent=1 // pred_region
      _
    $region9: #{tpu_custom_call.1} parent=1 // pred_fallthru
      _
    %p12 = scmp.eq.s32.totalorder 0, 0
    // Predicated region
    $region10: #{tpu_custom_call.1} parent=1 // pred_check
      %p13 = pneg %p12
    $region11: #{tpu_custom_call.1} parent=1 // pred_check_branch
      %15 = sbr.rel (%p13) target = $region13
    $region12: #{tpu_custom_call.1} parent=1 // pred_region
      %vm16 = vcmask 818176
      %17 = vst.msk [vmem:[#allocation2] sm:$0xff] %vm16, 0.0
    $region13: #{tpu_custom_call.1} parent=1 // pred_fallthru
      _
    %v18 = vlaneseq
    %v19 = vand.u32 %v18, 127
    %s20 = smul.u32 0, 100
    %v21 = vstv %s20
    %v22 = vadd.s32 %v19, %v21
    %v23 = vld [vmem:[#allocation2] sm:$0xff]
    %v24 = vld [vmem:[%s0] sm:$0xff]
    %v25 = vld [vmem:[%s1] sm:$0xff]
    %26 = vset.pattern.permute.xlu0 0
    %27 = vperm.xlu0 %26, %v25
    %v28 = vpop.permute.xlu0 %27
    %vm29 = vcmp.eq.s32.totalorder %v22, %v28
    %v30 = vmul.f32 %v24, 0.5
    %v31 = vtanh.pop %v30
    %v32 = vmul.f32 %v31, 0.5
    %v33 = vadd.f32 %v32, 0.5
    %v34 = vmax.f32 %v33, 0.05
    %v35 = vmin.f32 %v34, 0.95
    %v36 = vsub.f32 1.0, %v35
    %v37 = vsel %vm29, %v35, %v36
    %v38 = vsub.f32 1.0, %v37
    %v39 = vmul.f32 %v38, %v38
    %v40 = vmul.f32 %v39, %v39
    %v41 = vsel %vm29, %v38, %v40
    %v42 = vlog2.pop %v37
    %v43 = vmul.f32 %v42, 0.6931472
    %v44 = vsub.f32 0.0, %v43
    %v45 = vmul.f32 %v44, %v41
    %v46 = vadd.f32 %v23, %v45
    %vm47 = vcmask 818176
    %48 = vst.msk [vmem:[#allocation2] sm:$0xff] %vm47, %v46
    %v49 = vld [vmem:[#allocation2] sm:$0xff]
    %s50 = scalar_lea.vmem %s0, 8
    %v51 = vld [vmem:[%s50] sm:$0xff]
    %s52 = scalar_lea.vmem %s1, 8
    %v53 = vld [vmem:[%s52] sm:$0xff]
    %54 = vset.pattern.permute.xlu0 0
    %55 = vperm.xlu0 %54, %v53
    %v56 = vpop.permute.xlu0 %55
    %vm57 = vcmp.eq.s32.totalorder %v22, %v56
    %v58 = vmul.f32 %v51, 0.5
    %v59 = vtanh.pop %v58
    %v60 = vmul.f32 %v59, 0.5
    %v61 = vadd.f32 %v60, 0.5
    %v62 = vmax.f32 %v61, 0.05
    %v63 = vmin.f32 %v62, 0.95
    %v64 = vsub.f32 1.0, %v63
    %v65 = vsel %vm57, %v63, %v64
    %v66 = vsub.f32 1.0, %v65
    %v67 = vmul.f32 %v66, %v66
    %v68 = vmul.f32 %v67, %v67
    %v69 = vsel %vm57, %v66, %v68
    %v70 = vlog2.pop %v65
    %v71 = vmul.f32 %v70, 0.6931472
    %v72 = vsub.f32 0.0, %v71
    %v73 = vmul.f32 %v72, %v69
    %v74 = vadd.f32 %v49, %v73
    %75 = vst.msk [vmem:[#allocation2] sm:$0xff] %vm47, %v74
    // Predicated region
    $region14: #{tpu_custom_call.1} parent=1 // pred_check
      _
    $region15: #{tpu_custom_call.1} parent=1 // pred_check_branch
      %77 = sbr.rel (0) target = $region17
    $region16: #{tpu_custom_call.1} parent=1 // pred_region
      %s79 = ssub.s32 128, 128
      %80 = vsyncadd [#allocation3], %s79
      %s82 = sshll.u32 [#allocation2], 4
      %s83 = int_to_ptr.vmem [resolvable:$true] %s82
      %85 = dma.vmem_to_hbm [thread:$0]  %s83, 128, %s2, [#allocation3]
    $region17: #{tpu_custom_call.1} parent=1 // pred_fallthru
      _
    // Predicated region
    $region18: #{tpu_custom_call.1} parent=1 // pred_check
      _
    $region19: #{tpu_custom_call.1} parent=1 // pred_check_branch
      %87 = sbr.rel (0) target = $region21
    $region20: #{tpu_custom_call.1} parent=1 // pred_region
      %88 = dma.done [#allocation3], 128
    $region21: #{tpu_custom_call.1} parent=1 // pred_fallthru
      _
    %89 = vsyncpa [#allocation3], 1

</llo_original>
